<compile_context>
chip_gen: v7x
topology: tpu7x:2x2x1
jax: 0.10.0
libtpu: 0.0.40
codegen_flags: <defaults>
</compile_context>

<pallas_src>
import functools
from typing import NamedTuple

import jax
import jax.numpy as jnp
from jax import lax
from jax.experimental import pallas as pl
from jax.experimental.pallas import tpu as pltpu


def _round_up(x, m):
    return ((x + m - 1) // m) * m


class ASNetParams(NamedTuple):
    """Pre-packed, VMEM-layout-friendly parameters (build once, reuse per call)."""
    w1: jax.Array  # (in_dim, h_p)  bf16   == W1^T, hidden zero-padded to h_p
    b1: jax.Array  # (1, h_p)       f32
    w2: jax.Array  # (h_p, out_p)   bf16   == W2^T, zero-padded
    b2: jax.Array  # (1, out_p)     f32


def prepare_params(w1, b1, w2, b2, *, compute_dtype=jnp.bfloat16) -> ASNetParams:
    """One-time repack of PyTorch-layout Linear params (out_f, in_f)."""
    hidden, in_dim = w1.shape
    out_dim = w2.shape[0]
    # TODO(synk): consider 256-alignment of h_p/out_p for large MXU-bound
    # configs on v6e/v7x (2x256 MXU); 128 is kept here to minimize padding.
    h_p = _round_up(hidden, 128)
    out_p = _round_up(out_dim, 128)
    cd = compute_dtype
    w1_p = jnp.zeros((in_dim, h_p), cd).at[:, :hidden].set(w1.T.astype(cd))
    b1_p = jnp.zeros((1, h_p), jnp.float32).at[0, :hidden].set(b1.astype(jnp.float32))
    w2_p = jnp.zeros((h_p, out_p), cd).at[:hidden, :out_dim].set(w2.T.astype(cd))
    b2_p = jnp.zeros((1, out_p), jnp.float32).at[0, :out_dim].set(b2.astype(jnp.float32))
    return ASNetParams(w1_p, b1_p, w2_p, b2_p)


def asnet_kernel(x_ref, w1_ref, b1_ref, w2_ref, b2_ref, o_ref, *, sub_rows, h_chunks):
    """out = relu(x @ W1^T + b1) @ W2^T + b2, fused, bf16 MXU / f32 accumulate."""
    tile_b = x_ref.shape[0]
    out_p = o_ref.shape[1]

    # Hoisted bias broadcasts (defined once; reused by every unrolled sub-tile
    # -- JAX does not CSE broadcast_in_dim).
    b1b = [jnp.broadcast_to(b1_ref[:, s:s + n], (sub_rows, n)) for (s, n) in h_chunks]
    b2b = jnp.broadcast_to(b2_ref[...], (sub_rows, out_p))

    def compute(x_tile):
        out = b2b
        # Hidden dim in <=256-wide chunks: the f32 intermediate stays
        # vreg-friendly and the MXU remains the binding unit.
        for idx, (s, n) in enumerate(h_chunks):
            h = jnp.dot(x_tile, w1_ref[:, s:s + n],
                        preferred_element_type=jnp.float32)
            h = jnp.maximum(h + b1b[idx], 0.0)
            out = out + jnp.dot(h.astype(w2_ref.dtype), w2_ref[s:s + n, :],
                                preferred_element_type=jnp.float32)
        return out.astype(o_ref.dtype)

    n_sub = tile_b // sub_rows  # static
    if n_sub == 1:
        o_ref[...] = compute(x_ref[...])
    else:
        def body(i, carry):
            r = pl.multiple_of(i * sub_rows, sub_rows)
            o_ref[pl.ds(r, sub_rows), :] = compute(x_ref[pl.ds(r, sub_rows), :])
            return carry

        lax.fori_loop(0, n_sub, body, 0, unroll=True)


def asnet_forward(x, params: ASNetParams, out_dim, *, tile_b=None,
                  out_dtype=jnp.float32):
    """Fused ASNet forward. x: (B, in_dim) f32; returns (B, out_dim) out_dtype.

    Designed to be wrapped in jax.jit (static: out_dim, tile_b, out_dtype) so
    the batch pad / bf16 cast of x fuses with the pallas_call.
    """
    B, in_dim = x.shape
    assert params.w1.shape[0] == in_dim, "params were packed for a different in_dim"
    h_p = params.w1.shape[1]
    out_p = params.w2.shape[1]
    cd = params.w1.dtype
    out_kernel_dtype = jnp.bfloat16  # halve writeback; accuracy is bf16-limited anyway

    # ---- batch tiling (>=2 parallel steps for v7x's 2 TCs when batch is big) --
    B8 = _round_up(B, 8)
    if tile_b is None:
        if B8 >= 256:
            tile_b = min(512, max(128, _round_up((B8 + 1) // 2, 128)))
        else:
            tile_b = B8
    tile_b = _round_up(tile_b, 8)
    if tile_b > 128:
        tile_b = _round_up(tile_b, 128)
    B_pad = _round_up(B8, tile_b)
    grid = (B_pad // tile_b,)
    sub_rows = tile_b if tile_b <= 128 else 128

    # ---- hidden-dim chunks (static) ----------------------------------------
    h_chunk_max = min(h_p, 256)
    h_chunks, s = [], 0
    while s < h_p:
        n = min(h_chunk_max, h_p - s)
        h_chunks.append((s, n))
        s += n
    h_chunks = tuple(h_chunks)

    # ---- generation-aware VMEM budget ---------------------------------------
    try:
        vmem_cap = int(pltpu.get_tpu_info().vmem_capacity_bytes)
    except Exception:
        vmem_cap = 64 * 1024 * 1024  # conservative: v7x per-TC
    usable = int(vmem_cap * 0.78)    # headroom for Mosaic internal scratch

    bpe = jnp.dtype(cd).itemsize
    obpe = jnp.dtype(out_kernel_dtype).itemsize
    weight_bytes = (in_dim * h_p + h_p * out_p) * bpe + (h_p + out_p) * 4  # Buffered(1)
    io_bytes = 2 * tile_b * in_dim * bpe + 2 * tile_b * out_p * obpe        # double-buffered x / out
    scratch_bytes = sub_rows * (h_chunk_max + 2 * out_p + h_p) * 4          # h chunk + acc + hoisted biases
    vmem_estimate = weight_bytes + io_bytes + scratch_bytes + (2 << 20)
    if vmem_estimate > usable:
        # TODO(synk): K-tiled fallback (extra "arbitrary" grid axis over hidden
        # chunks + VMEM f32 accumulator with pl.when init/finalize) for weights
        # too large to stay VMEM-resident, especially on v7x (64 MiB).
        raise NotImplementedError("ASNet weights too large for resident-VMEM kernel")
    vmem_limit = int(min(usable, max(int(vmem_estimate * 1.3), 32 * 1024 * 1024)))

    cost = pl.CostEstimate(
        flops=int(2 * B_pad * (in_dim * h_p + h_p * out_p)),
        transcendentals=0,
        bytes_accessed=int(B_pad * in_dim * bpe + weight_bytes + B_pad * out_p * obpe),
    )

    # ---- fused pad/cast of x (stays inside the caller's jit) -----------------
    x_c = x.astype(cd)
    if B_pad != B:
        x_c = jnp.pad(x_c, ((0, B_pad - B), (0, 0)))

    out_padded = pl.pallas_call(
        functools.partial(asnet_kernel, sub_rows=sub_rows, h_chunks=h_chunks),
        out_shape=jax.ShapeDtypeStruct((B_pad, out_p), out_kernel_dtype),
        grid_spec=pltpu.PrefetchScalarGridSpec(
            num_scalar_prefetch=0,
            grid=grid,
            in_specs=[
                # x tile: true feature dim (full-array block on last dim is legal).
                pl.BlockSpec((tile_b, in_dim), lambda i: (i, 0)),
                # Resident parameters: constant index -> single-buffered.
                pl.BlockSpec((in_dim, h_p), lambda i: (0, 0),
                             pipeline_mode=pl.Buffered(1)),
                pl.BlockSpec((1, h_p), lambda i: (0, 0),
                             pipeline_mode=pl.Buffered(1)),
                pl.BlockSpec((h_p, out_p), lambda i: (0, 0),
                             pipeline_mode=pl.Buffered(1)),
                pl.BlockSpec((1, out_p), lambda i: (0, 0),
                             pipeline_mode=pl.Buffered(1)),
            ],
            out_specs=pl.BlockSpec((tile_b, out_p), lambda i: (i, 0)),
        ),
        compiler_params=pltpu.CompilerParams(
            dimension_semantics=("parallel",),
            vmem_limit_bytes=vmem_limit,
        ),
        cost_estimate=cost,
    )(x_c, params.w1, params.b1, params.w2, params.b2)

    return out_padded[:B, :out_dim].astype(out_dtype)


if __name__ == "__main__":
    # Small shapes consistent with ASNet(args, in_dim, out_dim):
    #   in_dim=32, args['model.ASNet_hidden_dim']=64, out_dim=16, batch=16
    B, in_dim, hidden, out_dim = 16, 32, 64, 16

    key = jax.random.PRNGKey(0)
    kx, k1, k2, k3, k4 = jax.random.split(key, 5)

    x = jax.random.normal(kx, (B, in_dim), dtype=jnp.float32)
    # PyTorch nn.Linear stores weight as (out_features, in_features).
    w1 = jax.random.normal(k1, (hidden, in_dim), dtype=jnp.float32) * 0.1
    b1 = jax.random.normal(k2, (hidden,), dtype=jnp.float32) * 0.1
    w2 = jax.random.normal(k3, (out_dim, hidden), dtype=jnp.float32) * 0.1
    b2 = jax.random.normal(k4, (out_dim,), dtype=jnp.float32) * 0.1

    # One-time repack (hoisted out of the per-call path), then a jitted forward.
    params = prepare_params(w1, b1, w2, b2)
    fwd = jax.jit(asnet_forward, static_argnames=("out_dim", "tile_b", "out_dtype"))

    out = jax.block_until_ready(fwd(x, params, out_dim=out_dim))

    # Pure-JAX reference of the PyTorch forward: relu(x @ W1.T + b1) @ W2.T + b2
    ref = jnp.maximum(x @ w1.T + b1, 0.0) @ w2.T + b2
    assert out.shape == (B, out_dim)
    # bf16 matmuls with f32 accumulation -> tolerance loosened accordingly.
    assert jnp.allclose(out, ref, atol=2e-2, rtol=2e-2), float(
        jnp.max(jnp.abs(out - ref))
    )

    print("KERNEL_OK")
</pallas_src>

<mosaic_0001>
module attributes {stable_mosaic.version = 11 : i64} {
  func.func @asnet_kernel(%arg0: i32, %arg1: memref<16x32xbf16, #tpu.memory_space<vmem>>, %arg2: memref<32x128xbf16, #tpu.memory_space<vmem>>, %arg3: memref<1x128xf32, #tpu.memory_space<vmem>>, %arg4: memref<128x128xbf16, #tpu.memory_space<vmem>>, %arg5: memref<1x128xf32, #tpu.memory_space<vmem>>, %arg6: memref<16x128xbf16, #tpu.memory_space<vmem>>) attributes {dimension_semantics = [#tpu.dimension_semantics<parallel>], iteration_bounds = array<i64: 1>, scalar_prefetch = 0 : i64, scratch_operands = 0 : i64, tpu.core_type = #tpu.core_type<tc>, window_params = [{transform_indices = @transform_0, window_bounds = array<i64: 16, 32>}, {pipeline_mode = #tpu.pipeline_mode<synchronous>, transform_indices = @transform_1, window_bounds = array<i64: 32, 128>}, {pipeline_mode = #tpu.pipeline_mode<synchronous>, transform_indices = @transform_2, window_bounds = array<i64: 1, 128>}, {pipeline_mode = #tpu.pipeline_mode<synchronous>, transform_indices = @transform_3, window_bounds = array<i64: 128, 128>}, {pipeline_mode = #tpu.pipeline_mode<synchronous>, transform_indices = @transform_4, window_bounds = array<i64: 1, 128>}, {transform_indices = @transform_5, window_bounds = array<i64: 16, 128>}]} {
    %c0 = arith.constant 0 : index
    %c0_0 = arith.constant 0 : index
    %0 = vector.load %arg3[%c0, %c0_0] : memref<1x128xf32, #tpu.memory_space<vmem>>, vector<1x128xf32>
    %1 = vector.shape_cast %0 : vector<1x128xf32> to vector<1x128xf32>
    %2 = vector.broadcast %1 : vector<1x128xf32> to vector<16x128xf32>
    %c0_1 = arith.constant 0 : index
    %c0_2 = arith.constant 0 : index
    %3 = vector.load %arg5[%c0_1, %c0_2] : memref<1x128xf32, #tpu.memory_space<vmem>>, vector<1x128xf32>
    %4 = vector.shape_cast %3 : vector<1x128xf32> to vector<1x128xf32>
    %5 = vector.broadcast %4 : vector<1x128xf32> to vector<16x128xf32>
    %c0_3 = arith.constant 0 : index
    %c0_4 = arith.constant 0 : index
    %6 = vector.load %arg1[%c0_3, %c0_4] : memref<16x32xbf16, #tpu.memory_space<vmem>>, vector<16x32xbf16>
    %c0_5 = arith.constant 0 : index
    %c0_6 = arith.constant 0 : index
    %7 = vector.load %arg2[%c0_5, %c0_6] : memref<32x128xbf16, #tpu.memory_space<vmem>>, vector<32x128xbf16>
    %cst = arith.constant dense<0.000000e+00> : vector<16x128xf32>
    %8 = tpu.matmul %6, %7, %cst {dimension_numbers = #tpu.dot_dimension_numbers<[1], [0], [0], [1], [0, 0, 1, 1], [], []>} : vector<16x32xbf16>, vector<32x128xbf16>, vector<16x128xf32> -> vector<16x128xf32>
    %9 = arith.addf %8, %2 : vector<16x128xf32>
    %cst_7 = arith.constant 0.000000e+00 : f32
    %10 = vector.broadcast %cst_7 : f32 to vector<16x128xf32>
    %11 = arith.maximumf %9, %10 : vector<16x128xf32>
    %12 = arith.truncf %11 : vector<16x128xf32> to vector<16x128xbf16>
    %c0_8 = arith.constant 0 : index
    %c0_9 = arith.constant 0 : index
    %13 = vector.load %arg4[%c0_8, %c0_9] : memref<128x128xbf16, #tpu.memory_space<vmem>>, vector<128x128xbf16>
    %cst_10 = arith.constant dense<0.000000e+00> : vector<16x128xf32>
    %14 = tpu.matmul %12, %13, %cst_10 {dimension_numbers = #tpu.dot_dimension_numbers<[1], [0], [0], [1], [0, 0, 1, 1], [], []>} : vector<16x128xbf16>, vector<128x128xbf16>, vector<16x128xf32> -> vector<16x128xf32>
    %15 = arith.addf %5, %14 : vector<16x128xf32>
    %16 = arith.truncf %15 : vector<16x128xf32> to vector<16x128xbf16>
    %c0_11 = arith.constant 0 : index
    %c0_12 = arith.constant 0 : index
    %17 = vector.load %arg6[%c0_11, %c0_12] : memref<16x128xbf16, #tpu.memory_space<vmem>>, vector<16x128xbf16>
    tpu.vector_store %arg6[%c0_11, %c0_12], %16 {strides = array<i32>} : memref<16x128xbf16, #tpu.memory_space<vmem>>, vector<16x128xbf16>,
    return
  }
  func.func @transform_0(%arg0: i32) -> (i32, i32) {
    %c0_i32 = arith.constant 0 : i32
    %c0_i32_0 = arith.constant 0 : i32
    return %arg0, %c0_i32 : i32, i32
  }
  func.func @transform_1(%arg0: i32) -> (i32, i32) {
    %c0_i32 = arith.constant 0 : i32
    %c0_i32_0 = arith.constant 0 : i32
    %c0_i32_1 = arith.constant 0 : i32
    return %c0_i32, %c0_i32_0 : i32, i32
  }
  func.func @transform_2(%arg0: i32) -> (i32, i32) {
    %c0_i32 = arith.constant 0 : i32
    %c0_i32_0 = arith.constant 0 : i32
    %c0_i32_1 = arith.constant 0 : i32
    return %c0_i32, %c0_i32_0 : i32, i32
  }
  func.func @transform_3(%arg0: i32) -> (i32, i32) {
    %c0_i32 = arith.constant 0 : i32
    %c0_i32_0 = arith.constant 0 : i32
    %c0_i32_1 = arith.constant 0 : i32
    return %c0_i32, %c0_i32_0 : i32, i32
  }
  func.func @transform_4(%arg0: i32) -> (i32, i32) {
    %c0_i32 = arith.constant 0 : i32
    %c0_i32_0 = arith.constant 0 : i32
    %c0_i32_1 = arith.constant 0 : i32
    return %c0_i32, %c0_i32_0 : i32, i32
  }
  func.func @transform_5(%arg0: i32) -> (i32, i32) {
    %c0_i32 = arith.constant 0 : i32
    %c0_i32_0 = arith.constant 0 : i32
    return %arg0, %c0_i32 : i32, i32
  }
}

</mosaic_0001>

<llo_original>
// kernel: asnet_forward.1
$region0: #{asnet_forward.1}
  #allocation0 [shape = 'u32[]', space=smem, size = 0x4, offset = 0x4, fixed_abs, tag = 'smem constant byte address 0x4 - core index']
  #allocation1 [shape = 'u32[144,128]{1,0:T(1,128)}', space=vmem, size = 0x12000, scoped, tag = 'internal scratch']
  %s0 = inlined_call_operand.vmem [shape: bf16[16,32], index: 0, kind: input, shape index: {}]
  %s1 = inlined_call_operand.vmem [shape: bf16[32,128], index: 1, kind: input, shape index: {}]
  %s2 = inlined_call_operand.vmem [shape: f32[1,128], index: 2, kind: input, shape index: {}]
  %s3 = inlined_call_operand.hbm [shape: bf16[128,128], index: 3, kind: input, shape index: {}]
  %s4 = inlined_call_operand.vmem [shape: f32[1,128], index: 4, kind: input, shape index: {}]
  %s5 = inlined_call_operand.vmem [shape: bf16[16,128], index: 5, kind: output, shape index: {}]
  %s6 = sld [smem:[#allocation0]]
  $region34: #{asnet_forward.1} parent=0
    _
  %s8 = ssub.s32 1, %s6
  %s9 = scalar_select 0, %s8, %s6
  $region1: #{asnet_forward.1} parent=0
    #allocation2 [shape = 'u8[32768]{0}', space=vmem, size = 0x8000, scoped, tag = 'input window, operand 3, single buffered']
    #allocation3 [shape = 's32[1]{0}', space=sflag, size = 0x4, scoped, tag = 'scoped memory for asnet_forward.1']
    %10 = vsyncpa [#allocation3], 0
    // Predicated region
    $region2: #{asnet_forward.1} parent=1 // pred_check
      _
    $region3: #{asnet_forward.1} parent=1 // pred_check_branch
      %12 = sbr.rel (0) target = $region5
    $region4: #{asnet_forward.1} parent=1 // pred_region
      _
    $region5: #{asnet_forward.1} parent=1 // pred_fallthru
      _
    // Predicated region
    $region6: #{asnet_forward.1} parent=1 // pred_check
      _
    $region7: #{asnet_forward.1} parent=1 // pred_check_branch
      %14 = sbr.rel (0) target = $region9
    $region8: #{asnet_forward.1} parent=1 // pred_region
      _
    $region9: #{asnet_forward.1} parent=1 // pred_fallthru
      _
    // Predicated region
    $region10: #{asnet_forward.1} parent=1 // pred_check
      _
    $region11: #{asnet_forward.1} parent=1 // pred_check_branch
      %16 = sbr.rel (0) target = $region13
    $region12: #{asnet_forward.1} parent=1 // pred_region
      _
    $region13: #{asnet_forward.1} parent=1 // pred_fallthru
      _
    // Predicated region
    $region14: #{asnet_forward.1} parent=1 // pred_check
      _
    $region15: #{asnet_forward.1} parent=1 // pred_check_branch
      %18 = sbr.rel (0) target = $region17
    $region16: #{asnet_forward.1} parent=1 // pred_region
      %s20 = ssub.s32 1024, 1024
      %21 = vsyncadd [#allocation3], %s20
      %s22 = sshll.u32 [#allocation2], 4
      %s23 = int_to_ptr.vmem [resolvable:$true] %s22
      %28 = dma.hbm_to_vmem [thread:$0]  %s3, 1024, %s23, [#allocation3], 64, 64, 4
    $region17: #{asnet_forward.1} parent=1 // pred_fallthru
      _
    // Predicated region
    $region18: #{asnet_forward.1} parent=1 // pred_check
      _
    $region19: #{asnet_forward.1} parent=1 // pred_check_branch
      %30 = sbr.rel (0) target = $region21
    $region20: #{asnet_forward.1} parent=1 // pred_region
      _
    $region21: #{asnet_forward.1} parent=1 // pred_fallthru
      _
    // Predicated region
    $region22: #{asnet_forward.1} parent=1 // pred_check
      _
    $region23: #{asnet_forward.1} parent=1 // pred_check_branch
      %32 = sbr.rel (0) target = $region25
    $region24: #{asnet_forward.1} parent=1 // pred_region
      %33 = dma.done [#allocation3], 1024
    $region25: #{asnet_forward.1} parent=1 // pred_fallthru
      _
    %v35 = vld [vmem:[%s2] sm:$0x1]
    %v37 = vlaneseq
    %v38 = vshrl.u32 %v37, 7
    %v39 = vsub.s32 0, %v38
    %v40 = vrot.slane %v35, %v39
    %v42 = vld [vmem:[%s4] sm:$0x1]
    %v44 = vlaneseq
    %v45 = vshrl.u32 %v44, 7
    %v46 = vsub.s32 0, %v45
    %v47 = vrot.slane %v42, %v46
    %v49 = vld [vmem:[%s0] sm:$0xf]
    %v50 = vld [vmem:[%s0 + $0x4] sm:$0xf]
    %v51 = vld [vmem:[%s1] sm:$0xf]
    %v52 = vld [vmem:[%s1 + $0x4] sm:$0xf]
    %v53 = vld [vmem:[%s1 + $0x8] sm:$0xf]
    %v54 = vld [vmem:[%s1 + $0xc] sm:$0xf]
    %v57 = vunpack.c.l.b16 %v49
    %v58 = vunpack.c.l.b16 %v50
    %v59 = vpack.c.b16 %v58, %v57
    %v64 = vunpack.c.l.b16 %v51
    %v65 = vunpack.c.l.b16 %v52
    %v66 = vunpack.c.l.b16 %v53
    %v67 = vunpack.c.l.b16 %v54
    %v68 = vpack.c.b16 %v65, %v64
    %v69 = vpack.c.b16 %v67, %v66
    %vm72 = vcmask 261120
    %v74 = vsel %vm72, %v59, 0
    %76 = vmatprep.subr.bf16.mxu0 0
    %77 = vmatpush1.bf16.msra.mxu0 %v68
    %78 = vmatprep.subr.bf16.mxu0 0
    %79 = vmatpush1.bf16.msra.mxu0 %v69
    %80 = vmatprep.subr.bf16.mxu0 0
    %81 = vmatpush1.bf16.msra.mxu0 0
    %82 = vmatprep.subr.bf16.mxu0 0
    %83 = vmatpush1.bf16.msra.mxu0 0
    %84 = vmatprep.subr.bf16.mxu0 0
    %85 = vmatpush1.bf16.msra.mxu0 0
    %86 = vmatprep.subr.bf16.mxu0 0
    %87 = vmatpush1.bf16.msra.mxu0 0
    %88 = vmatprep.subr.bf16.mxu0 0
    %89 = vmatpush1.bf16.msra.mxu0 0
    %90 = vmatprep.subr.bf16.mxu0 0
    %91 = vmatpush1.bf16.msra.mxu0 0
    %92 = vmatprep.subr.bf16.mxu0 0
    %93 = vmatpush1.bf16.msra.mxu0 0
    %94 = vmatprep.subr.bf16.mxu0 0
    %95 = vmatpush1.bf16.msra.mxu0 0
    %96 = vmatprep.subr.bf16.mxu0 0
    %97 = vmatpush1.bf16.msra.mxu0 0
    %98 = vmatprep.subr.bf16.mxu0 0
    %99 = vmatpush1.bf16.msra.mxu0 0
    %100 = vmatprep.subr.bf16.mxu0 0
    %101 = vmatpush1.bf16.msra.mxu0 0
    %102 = vmatprep.subr.bf16.mxu0 0
    %103 = vmatpush1.bf16.msra.mxu0 0
    %104 = vmatprep.subr.bf16.mxu0 0
    %105 = vmatpush1.bf16.msra.mxu0 0
    %106 = vmatprep.subr.bf16.mxu0 0
    %107 = vmatpush1.bf16.msra.mxu0 0
    %108 = vmatprep.mubr.bf16.mxu0 0
    %109 = vmatmul.mubr.bf16.gmra.mrb[0].mxu0 %v74
    %v110 = vpop.f32.mrb[0].mxu0
    %v111 = vadd.f32 %v40, %v110
    %v112 = vpop.f32.mrb[0].mxu0
    %v113 = vpop.f32.mrb[0].mxu0
    %v114 = vadd.f32 %v40, %v113
    %v115 = vpop.f32.mrb[0].mxu0
    %116 = vdwg.mxu0
    %v117 = vmax.f32 %v111, 0.0
    %v118 = vmax.f32 %v114, 0.0
    %v119 = vpack.c.bf16 %v118, %v117
    %v120 = vld [vmem:[#allocation2] sm:$0xf]
    %v121 = vld [vmem:[#allocation2 + $0x4] sm:$0xf]
    %v122 = vld [vmem:[#allocation2 + $0x8] sm:$0xf]
    %v123 = vld [vmem:[#allocation2 + $0xc] sm:$0xf]
    %v124 = vld [vmem:[#allocation2 + $0x10] sm:$0xf]
    %v125 = vld [vmem:[#allocation2 + $0x14] sm:$0xf]
    %v126 = vld [vmem:[#allocation2 + $0x18] sm:$0xf]
    %v127 = vld [vmem:[#allocation2 + $0x1c] sm:$0xf]
    %v128 = vld [vmem:[#allocation2 + $0x20] sm:$0xf]
    %v129 = vld [vmem:[#allocation2 + $0x24] sm:$0xf]
    %v130 = vld [vmem:[#allocation2 + $0x28] sm:$0xf]
    %v131 = vld [vmem:[#allocation2 + $0x2c] sm:$0xf]
    %v132 = vld [vmem:[#allocation2 + $0x30] sm:$0xf]
    %v133 = vld [vmem:[#allocation2 + $0x34] sm:$0xf]
    %v134 = vld [vmem:[#allocation2 + $0x38] sm:$0xf]
    %v135 = vld [vmem:[#allocation2 + $0x3c] sm:$0xf]
    %v152 = vunpack.c.l.b16 %v120
    %v153 = vunpack.c.l.b16 %v121
    %v154 = vunpack.c.l.b16 %v122
    %v155 = vunpack.c.l.b16 %v123
    %v156 = vunpack.c.l.b16 %v124
    %v157 = vunpack.c.l.b16 %v125
    %v158 = vunpack.c.l.b16 %v126
    %v159 = vunpack.c.l.b16 %v127
    %v160 = vunpack.c.l.b16 %v128
    %v161 = vunpack.c.l.b16 %v129
    %v162 = vunpack.c.l.b16 %v130
    %v163 = vunpack.c.l.b16 %v131
    %v164 = vunpack.c.l.b16 %v132
    %v165 = vunpack.c.l.b16 %v133
    %v166 = vunpack.c.l.b16 %v134
    %v167 = vunpack.c.l.b16 %v135
    %v168 = vpack.c.b16 %v153, %v152
    %v169 = vpack.c.b16 %v155, %v154
    %v170 = vpack.c.b16 %v157, %v156
    %v171 = vpack.c.b16 %v159, %v158
    %v172 = vpack.c.b16 %v161, %v160
    %v173 = vpack.c.b16 %v163, %v162
    %v174 = vpack.c.b16 %v165, %v164
    %v175 = vpack.c.b16 %v167, %v166
    %184 = vmatprep.subr.bf16.mxu0 0
    %185 = vmatpush1.bf16.msra.mxu0 %v168
    %186 = vmatprep.subr.bf16.mxu0 0
    %187 = vmatpush1.bf16.msra.mxu0 %v169
    %188 = vmatprep.subr.bf16.mxu0 0
    %189 = vmatpush1.bf16.msra.mxu0 %v170
    %190 = vmatprep.subr.bf16.mxu0 0
    %191 = vmatpush1.bf16.msra.mxu0 %v171
    %192 = vmatprep.subr.bf16.mxu0 0
    %193 = vmatpush1.bf16.msra.mxu0 %v172
    %194 = vmatprep.subr.bf16.mxu0 0
    %195 = vmatpush1.bf16.msra.mxu0 %v173
    %196 = vmatprep.subr.bf16.mxu0 0
    %197 = vmatpush1.bf16.msra.mxu0 %v174
    %198 = vmatprep.subr.bf16.mxu0 0
    %199 = vmatpush1.bf16.msra.mxu0 %v175
    %200 = vmatprep.subr.bf16.mxu0 0
    %201 = vmatpush1.bf16.msra.mxu0 0
    %202 = vmatprep.subr.bf16.mxu0 0
    %203 = vmatpush1.bf16.msra.mxu0 0
    %204 = vmatprep.subr.bf16.mxu0 0
    %205 = vmatpush1.bf16.msra.mxu0 0
    %206 = vmatprep.subr.bf16.mxu0 0
    %207 = vmatpush1.bf16.msra.mxu0 0
    %208 = vmatprep.subr.bf16.mxu0 0
    %209 = vmatpush1.bf16.msra.mxu0 0
    %210 = vmatprep.subr.bf16.mxu0 0
    %211 = vmatpush1.bf16.msra.mxu0 0
    %212 = vmatprep.subr.bf16.mxu0 0
    %213 = vmatpush1.bf16.msra.mxu0 0
    %214 = vmatprep.subr.bf16.mxu0 0
    %215 = vmatpush1.bf16.msra.mxu0 0
    %216 = vmatprep.mubr.bf16.mxu0 0
    %217 = vmatmul.mubr.bf16.gmra.mrb[0].mxu0 %v119
    %v218 = vpop.f32.mrb[0].mxu0
    %v219 = vadd.f32 0.0, %v218
    %v220 = vpop.f32.mrb[0].mxu0
    %v221 = vpop.f32.mrb[0].mxu0
    %v222 = vadd.f32 0.0, %v221
    %v223 = vpop.f32.mrb[0].mxu0
    %224 = vdwg.mxu0
    %v225 = vadd.f32 %v47, %v219
    %v226 = vadd.f32 %v47, %v222
    %v227 = vpack.c.bf16 %v226, %v225
    %v229 = vunpack.c.l.b16 %v227
    %v230 = vunpack.c.h.b16 %v227
    %v231 = vpack.c.b16 %v229, %v229
    %v232 = vpack.c.b16 %v230, %v230
    %235 = vst [vmem:[%s5] sm:$0xf] %v231
    %236 = vst [vmem:[%s5 + $0x4] sm:$0xf] %v232
    // Predicated region
    $region26: #{asnet_forward.1} parent=1 // pred_check
      _
    $region27: #{asnet_forward.1} parent=1 // pred_check_branch
      %238 = sbr.rel (0) target = $region29
    $region28: #{asnet_forward.1} parent=1 // pred_region
      _
    $region29: #{asnet_forward.1} parent=1 // pred_fallthru
      _
    // Predicated region
    $region30: #{asnet_forward.1} parent=1 // pred_check
      _
    $region31: #{asnet_forward.1} parent=1 // pred_check_branch
      %240 = sbr.rel (0) target = $region33
    $region32: #{asnet_forward.1} parent=1 // pred_region
      _
    $region33: #{asnet_forward.1} parent=1 // pred_fallthru
      _
    %241 = vsyncpa [#allocation3], 1

</llo_original>
